<compile_context>
chip_gen: v5e
topology: v5e:2x2
jax: 0.10.0
libtpu: 0.0.40
codegen_flags: <defaults>
</compile_context>

<pallas_src>
import jax
import jax.numpy as jnp
from jax.experimental import pallas as pl
from jax.experimental.pallas import tpu as pltpu

_TB_MAX = 1024                           # batch tile (rows); multiple of 8, sweep 1024-4096
_MXU_PREC = jax.lax.Precision.HIGHEST    # exact-f32 matmuls so the BN fold stays tight


# ----------------------------------------------------------------------------
# Pallas kernel: fused 3-layer MLP (matmul + bias + relu, final sigmoid)
# ----------------------------------------------------------------------------
def _decoder_kernel(z_ref, tm_ref, bp_ref, bc_ref,
                    w1z_ref, w1t_ref, w1p_ref, w1c_ref, b1_ref,
                    w2_ref, b2_ref,
                    w3_ref, b3_ref,
                    o_ref):
    # ---- block 1: Linear (torch.cat folded into a row-split of W1) -> ReLU ----
    # BN1 affine is folded into W2/b2; Dropout is identity in eval mode.
    h = jnp.dot(z_ref[...], w1z_ref[...],
                preferred_element_type=jnp.float32, precision=_MXU_PREC)
    bp = bp_ref[...]
    w1p = w1p_ref[...]
    h = h + bp[:, 0:1] * w1p[0:1, :]        # ballPosition.x contribution (VPU broadcast)
    h = h + bp[:, 1:2] * w1p[1:2, :]        # ballPosition.y contribution
    h = h + tm_ref[...] * w1t_ref[...]      # team contribution
    h = h + bc_ref[...] * w1c_ref[...]      # ballControl contribution
    h = h + b1_ref[...]
    h = jnp.maximum(h, 0.0)

    # ---- block 2: Linear (BN1 pre-folded) -> ReLU (BN2 folded into layer 3) ----
    h = jnp.dot(h, w2_ref[...],
                preferred_element_type=jnp.float32, precision=_MXU_PREC) + b2_ref[...]
    h = jnp.maximum(h, 0.0)

    # ---- final: Linear -> Sigmoid ----
    h = jnp.dot(h, w3_ref[...],
                preferred_element_type=jnp.float32, precision=_MXU_PREC) + b3_ref[...]
    # exp goes to the EUP; the divide is a negligible VPU cost in this mem-bound kernel.
    o_ref[...] = 1.0 / (1.0 + jnp.exp(-h))


# ----------------------------------------------------------------------------
# Parameter construction (deterministic, mirrors nn.Module.__init__ shapes)
# ----------------------------------------------------------------------------
def make_decoder_params(key, latent_dims, output_size, depth=3):
    """Linear weights stored pre-transposed as [in, out]; BN as folded (scale, shift)."""
    assert latent_dims < output_size
    step = (output_size - latent_dims) // depth if depth > 0 else 0
    in_dims = latent_dims + 4  # + (team, ballPosition(2), ballControl)

    dims = [in_dims + step * i for i in range(depth)] + [output_size]
    params = {}
    for li in range(depth):
        d_in, d_out = dims[li], dims[li + 1]
        key, kw, kb = jax.random.split(key, 3)
        bound = 1.0 / jnp.sqrt(d_in)
        params[f"w{li + 1}"] = jax.random.uniform(kw, (d_in, d_out), jnp.float32, -bound, bound)
        params[f"b{li + 1}"] = jax.random.uniform(kb, (1, d_out), jnp.float32, -bound, bound)
        if li < depth - 1:
            # BatchNorm1d(d_out): gamma, beta, running_mean, running_var -> affine
            key, kg, kbeta, km = jax.random.split(key, 4)
            gamma = 1.0 + 0.1 * jax.random.normal(kg, (1, d_out), jnp.float32)
            beta = 0.1 * jax.random.normal(kbeta, (1, d_out), jnp.float32)
            rmean = 0.1 * jax.random.normal(km, (1, d_out), jnp.float32)
            rvar = jnp.ones((1, d_out), jnp.float32)
            eps = 1e-5
            scale = gamma / jnp.sqrt(rvar + eps)
            shift = beta - rmean * scale
            params[f"s{li + 1}"] = scale
            params[f"t{li + 1}"] = shift
    return params, dims


def fold_decoder_params(params, latent_dims, depth=3):
    """Kernel-ready params: W1 row-split (removes the concat) + BN folded into the next Linear."""
    assert depth == 3, "kernel is specialized for the module's default depth=3"
    L = latent_dims
    w1 = params["w1"]
    hp = jax.lax.Precision.HIGHEST
    return {
        # concat([z, team, ballPosition, ballControl]) @ W1  ==  row-split of W1
        "w1z": w1[:L, :],
        "w1t": w1[L:L + 1, :],
        "w1p": w1[L + 1:L + 3, :],
        "w1c": w1[L + 3:L + 4, :],
        "b1": params["b1"],
        # BN affine folded into the following Linear (exact in eval mode)
        "w2": params["s1"].T * params["w2"],
        "b2": params["b2"] + jnp.dot(params["t1"], params["w2"], precision=hp),
        "w3": params["s2"].T * params["w3"],
        "b3": params["b3"] + jnp.dot(params["t2"], params["w3"], precision=hp),
    }


# ----------------------------------------------------------------------------
# Wrapper: batch-tiled pallas_call with VMEM-resident weights
# ----------------------------------------------------------------------------
@jax.jit
def decoder_forward(folded, z, team, ball_position, ball_control):
    batch, latent = z.shape
    output_size = folded["b3"].shape[1]

    z = z.astype(jnp.float32)
    tm = team.astype(jnp.float32)[:, None]
    bp = ball_position.astype(jnp.float32)
    bc = ball_control.astype(jnp.float32)[:, None]

    # Batch tile: either the whole (small) batch, or a multiple-of-8 tile that keeps
    # double-buffered activations well under the v7x 64 MiB VMEM budget.
    tb = batch if batch <= _TB_MAX else _TB_MAX
    grid = (pl.cdiv(batch, tb),)

    def row_spec(width):           # batch-tiled, auto double-buffered
        return pl.BlockSpec((tb, width), lambda i: (i, 0))

    def resident_spec(arr):        # whole array, constant block index -> DMA'd once
        return pl.BlockSpec(arr.shape, lambda i: (0, 0))

    weight_order = ("w1z", "w1t", "w1p", "w1c", "b1", "w2", "b2", "w3", "b3")
    weights = tuple(folded[k] for k in weight_order)

    return pl.pallas_call(
        _decoder_kernel,
        out_shape=jax.ShapeDtypeStruct((batch, output_size), jnp.float32),
        grid=grid,
        in_specs=[row_spec(latent), row_spec(1), row_spec(2), row_spec(1)]
                 + [resident_spec(w) for w in weights],
        out_specs=pl.BlockSpec((tb, output_size), lambda i: (i, 0)),
        compiler_params=pltpu.CompilerParams(
            dimension_semantics=("parallel",),      # shard batch tiles across TCs (v7x)
            vmem_limit_bytes=32 * 1024 * 1024,      # explicit, fits v5e/v6e/v7x budgets
        ),
    )(z, tm, bp, bc, *weights)


# ----------------------------------------------------------------------------
# Pure-JAX reference (un-folded params, PyTorch op order) for sanity checking
# ----------------------------------------------------------------------------
def decoder_reference(params, z, team, ball_position, ball_control):
    hp = jax.lax.Precision.HIGHEST
    x = jnp.concatenate([z, team[:, None], ball_position, ball_control[:, None]], axis=-1)
    h = jnp.maximum(jnp.dot(x, params["w1"], precision=hp) + params["b1"], 0.0)
    h = h * params["s1"] + params["t1"]
    h = jnp.maximum(jnp.dot(h, params["w2"], precision=hp) + params["b2"], 0.0)
    h = h * params["s2"] + params["t2"]
    h = jnp.dot(h, params["w3"], precision=hp) + params["b3"]
    return jax.nn.sigmoid(h)


if __name__ == "__main__":
    latent_dims = 8
    output_size = 32
    depth = 3
    batch = 16

    key = jax.random.PRNGKey(0)
    key, kp, kz, kt, kbp, kbc = jax.random.split(key, 6)

    params, dims = make_decoder_params(kp, latent_dims, output_size, depth)
    folded = fold_decoder_params(params, latent_dims, depth)

    z = jax.random.normal(kz, (batch, latent_dims), jnp.float32)
    team = jax.random.normal(kt, (batch,), jnp.float32)
    ball_position = jax.random.normal(kbp, (batch, 2), jnp.float32)
    ball_control = jax.random.normal(kbc, (batch,), jnp.float32)

    out = decoder_forward(folded, z, team, ball_position, ball_control)
    out = jax.block_until_ready(out)

    ref = decoder_reference(params, z, team, ball_position, ball_control)
    assert out.shape == (batch, output_size), out.shape
    max_err = float(jnp.max(jnp.abs(out - ref)))
    assert jnp.allclose(out, ref, atol=1e-4, rtol=1e-4), max_err

    print("KERNEL_OK")
</pallas_src>

<mosaic_0001>
module attributes {stable_mosaic.version = 11 : i64} {
  func.func @_decoder_kernel(%arg0: i32, %arg1: memref<16x8xf32, #tpu.memory_space<vmem>>, %arg2: memref<16x1xf32, #tpu.memory_space<vmem>>, %arg3: memref<16x2xf32, #tpu.memory_space<vmem>>, %arg4: memref<16x1xf32, #tpu.memory_space<vmem>>, %arg5: memref<8x20xf32, #tpu.memory_space<vmem>>, %arg6: memref<1x20xf32, #tpu.memory_space<vmem>>, %arg7: memref<2x20xf32, #tpu.memory_space<vmem>>, %arg8: memref<1x20xf32, #tpu.memory_space<vmem>>, %arg9: memref<1x20xf32, #tpu.memory_space<vmem>>, %arg10: memref<20x28xf32, #tpu.memory_space<vmem>>, %arg11: memref<1x28xf32, #tpu.memory_space<vmem>>, %arg12: memref<28x32xf32, #tpu.memory_space<vmem>>, %arg13: memref<1x32xf32, #tpu.memory_space<vmem>>, %arg14: memref<16x32xf32, #tpu.memory_space<vmem>>) attributes {dimension_semantics = [#tpu.dimension_semantics<parallel>], iteration_bounds = array<i64: 1>, scalar_prefetch = 0 : i64, scratch_operands = 0 : i64, tpu.core_type = #tpu.core_type<tc>, window_params = [{transform_indices = @transform_0, window_bounds = array<i64: 16, 8>}, {transform_indices = @transform_1, window_bounds = array<i64: 16, 1>}, {transform_indices = @transform_2, window_bounds = array<i64: 16, 2>}, {transform_indices = @transform_3, window_bounds = array<i64: 16, 1>}, {pipeline_mode = #tpu.pipeline_mode<synchronous>, transform_indices = @transform_4, window_bounds = array<i64: 8, 20>}, {pipeline_mode = #tpu.pipeline_mode<synchronous>, transform_indices = @transform_5, window_bounds = array<i64: 1, 20>}, {pipeline_mode = #tpu.pipeline_mode<synchronous>, transform_indices = @transform_6, window_bounds = array<i64: 2, 20>}, {pipeline_mode = #tpu.pipeline_mode<synchronous>, transform_indices = @transform_7, window_bounds = array<i64: 1, 20>}, {pipeline_mode = #tpu.pipeline_mode<synchronous>, transform_indices = @transform_8, window_bounds = array<i64: 1, 20>}, {pipeline_mode = #tpu.pipeline_mode<synchronous>, transform_indices = @transform_9, window_bounds = array<i64: 20, 28>}, {pipeline_mode = #tpu.pipeline_mode<synchronous>, transform_indices = @transform_10, window_bounds = array<i64: 1, 28>}, {pipeline_mode = #tpu.pipeline_mode<synchronous>, transform_indices = @transform_11, window_bounds = array<i64: 28, 32>}, {pipeline_mode = #tpu.pipeline_mode<synchronous>, transform_indices = @transform_12, window_bounds = array<i64: 1, 32>}, {transform_indices = @transform_13, window_bounds = array<i64: 16, 32>}]} {
    %c0 = arith.constant 0 : index
    %c0_0 = arith.constant 0 : index
    %0 = vector.load %arg1[%c0, %c0_0] : memref<16x8xf32, #tpu.memory_space<vmem>>, vector<16x8xf32>
    %c0_1 = arith.constant 0 : index
    %c0_2 = arith.constant 0 : index
    %1 = vector.load %arg5[%c0_1, %c0_2] : memref<8x20xf32, #tpu.memory_space<vmem>>, vector<8x20xf32>
    %cst = arith.constant dense<0.000000e+00> : vector<16x20xf32>
    %2 = tpu.matmul %0, %1, %cst {dimension_numbers = #tpu.dot_dimension_numbers<[1], [0], [0], [1], [0, 0, 1, 1], [], []>, precision = #tpu.contract_precision<fp32>} : vector<16x8xf32>, vector<8x20xf32>, vector<16x20xf32> -> vector<16x20xf32>
    %c0_3 = arith.constant 0 : index
    %c0_4 = arith.constant 0 : index
    %3 = vector.load %arg3[%c0_3, %c0_4] : memref<16x2xf32, #tpu.memory_space<vmem>>, vector<16x2xf32>
    %c0_5 = arith.constant 0 : index
    %c0_6 = arith.constant 0 : index
    %4 = vector.load %arg7[%c0_5, %c0_6] : memref<2x20xf32, #tpu.memory_space<vmem>>, vector<2x20xf32>
    %5 = vector.extract_strided_slice %3 {offsets = [0, 0], sizes = [16, 1], strides = [1, 1]} : vector<16x2xf32> to vector<16x1xf32>
    %6 = vector.extract_strided_slice %4 {offsets = [0, 0], sizes = [1, 20], strides = [1, 1]} : vector<2x20xf32> to vector<1x20xf32>
    %7 = vector.broadcast %5 : vector<16x1xf32> to vector<16x20xf32>
    %8 = vector.broadcast %6 : vector<1x20xf32> to vector<16x20xf32>
    %9 = arith.mulf %7, %8 : vector<16x20xf32>
    %10 = arith.addf %2, %9 : vector<16x20xf32>
    %11 = vector.extract_strided_slice %3 {offsets = [0, 1], sizes = [16, 1], strides = [1, 1]} : vector<16x2xf32> to vector<16x1xf32>
    %12 = vector.extract_strided_slice %4 {offsets = [1, 0], sizes = [1, 20], strides = [1, 1]} : vector<2x20xf32> to vector<1x20xf32>
    %13 = vector.broadcast %11 : vector<16x1xf32> to vector<16x20xf32>
    %14 = vector.broadcast %12 : vector<1x20xf32> to vector<16x20xf32>
    %15 = arith.mulf %13, %14 : vector<16x20xf32>
    %16 = arith.addf %10, %15 : vector<16x20xf32>
    %c0_7 = arith.constant 0 : index
    %c0_8 = arith.constant 0 : index
    %17 = vector.load %arg2[%c0_7, %c0_8] : memref<16x1xf32, #tpu.memory_space<vmem>>, vector<16x1xf32>
    %c0_9 = arith.constant 0 : index
    %c0_10 = arith.constant 0 : index
    %18 = vector.load %arg6[%c0_9, %c0_10] : memref<1x20xf32, #tpu.memory_space<vmem>>, vector<1x20xf32>
    %19 = vector.broadcast %17 : vector<16x1xf32> to vector<16x20xf32>
    %20 = vector.broadcast %18 : vector<1x20xf32> to vector<16x20xf32>
    %21 = arith.mulf %19, %20 : vector<16x20xf32>
    %22 = arith.addf %16, %21 : vector<16x20xf32>
    %c0_11 = arith.constant 0 : index
    %c0_12 = arith.constant 0 : index
    %23 = vector.load %arg4[%c0_11, %c0_12] : memref<16x1xf32, #tpu.memory_space<vmem>>, vector<16x1xf32>
    %c0_13 = arith.constant 0 : index
    %c0_14 = arith.constant 0 : index
    %24 = vector.load %arg8[%c0_13, %c0_14] : memref<1x20xf32, #tpu.memory_space<vmem>>, vector<1x20xf32>
    %25 = vector.broadcast %23 : vector<16x1xf32> to vector<16x20xf32>
    %26 = vector.broadcast %24 : vector<1x20xf32> to vector<16x20xf32>
    %27 = arith.mulf %25, %26 : vector<16x20xf32>
    %28 = arith.addf %22, %27 : vector<16x20xf32>
    %c0_15 = arith.constant 0 : index
    %c0_16 = arith.constant 0 : index
    %29 = vector.load %arg9[%c0_15, %c0_16] : memref<1x20xf32, #tpu.memory_space<vmem>>, vector<1x20xf32>
    %30 = vector.broadcast %29 : vector<1x20xf32> to vector<16x20xf32>
    %31 = arith.addf %28, %30 : vector<16x20xf32>
    %cst_17 = arith.constant 0.000000e+00 : f32
    %32 = vector.broadcast %cst_17 : f32 to vector<16x20xf32>
    %33 = arith.maximumf %31, %32 : vector<16x20xf32>
    %c0_18 = arith.constant 0 : index
    %c0_19 = arith.constant 0 : index
    %34 = vector.load %arg10[%c0_18, %c0_19] : memref<20x28xf32, #tpu.memory_space<vmem>>, vector<20x28xf32>
    %cst_20 = arith.constant dense<0.000000e+00> : vector<16x28xf32>
    %35 = tpu.matmul %33, %34, %cst_20 {dimension_numbers = #tpu.dot_dimension_numbers<[1], [0], [0], [1], [0, 0, 1, 1], [], []>, precision = #tpu.contract_precision<fp32>} : vector<16x20xf32>, vector<20x28xf32>, vector<16x28xf32> -> vector<16x28xf32>
    %c0_21 = arith.constant 0 : index
    %c0_22 = arith.constant 0 : index
    %36 = vector.load %arg11[%c0_21, %c0_22] : memref<1x28xf32, #tpu.memory_space<vmem>>, vector<1x28xf32>
    %37 = vector.broadcast %36 : vector<1x28xf32> to vector<16x28xf32>
    %38 = arith.addf %35, %37 : vector<16x28xf32>
    %cst_23 = arith.constant 0.000000e+00 : f32
    %39 = vector.broadcast %cst_23 : f32 to vector<16x28xf32>
    %40 = arith.maximumf %38, %39 : vector<16x28xf32>
    %c0_24 = arith.constant 0 : index
    %c0_25 = arith.constant 0 : index
    %41 = vector.load %arg12[%c0_24, %c0_25] : memref<28x32xf32, #tpu.memory_space<vmem>>, vector<28x32xf32>
    %cst_26 = arith.constant dense<0.000000e+00> : vector<16x32xf32>
    %42 = tpu.matmul %40, %41, %cst_26 {dimension_numbers = #tpu.dot_dimension_numbers<[1], [0], [0], [1], [0, 0, 1, 1], [], []>, precision = #tpu.contract_precision<fp32>} : vector<16x28xf32>, vector<28x32xf32>, vector<16x32xf32> -> vector<16x32xf32>
    %c0_27 = arith.constant 0 : index
    %c0_28 = arith.constant 0 : index
    %43 = vector.load %arg13[%c0_27, %c0_28] : memref<1x32xf32, #tpu.memory_space<vmem>>, vector<1x32xf32>
    %44 = vector.broadcast %43 : vector<1x32xf32> to vector<16x32xf32>
    %45 = arith.addf %42, %44 : vector<16x32xf32>
    %cst_29 = arith.constant 0.000000e+00 : f32
    %46 = vector.broadcast %cst_29 : f32 to vector<16x32xf32>
    %47 = arith.subf %46, %45 : vector<16x32xf32>
    %48 = math.exp %47 : vector<16x32xf32>
    %cst_30 = arith.constant 1.000000e+00 : f32
    %49 = vector.broadcast %cst_30 : f32 to vector<16x32xf32>
    %50 = arith.addf %49, %48 : vector<16x32xf32>
    %cst_31 = arith.constant 1.000000e+00 : f32
    %51 = vector.broadcast %cst_31 : f32 to vector<16x32xf32>
    %52 = arith.divf %51, %50 : vector<16x32xf32>
    %c0_32 = arith.constant 0 : index
    %c0_33 = arith.constant 0 : index
    %53 = vector.load %arg14[%c0_32, %c0_33] : memref<16x32xf32, #tpu.memory_space<vmem>>, vector<16x32xf32>
    tpu.vector_store %arg14[%c0_32, %c0_33], %52 {strides = array<i32>} : memref<16x32xf32, #tpu.memory_space<vmem>>, vector<16x32xf32>,
    return
  }
  func.func @transform_0(%arg0: i32) -> (i32, i32) {
    %c0_i32 = arith.constant 0 : i32
    %c0_i32_0 = arith.constant 0 : i32
    return %arg0, %c0_i32 : i32, i32
  }
  func.func @transform_1(%arg0: i32) -> (i32, i32) {
    %c0_i32 = arith.constant 0 : i32
    %c0_i32_0 = arith.constant 0 : i32
    return %arg0, %c0_i32 : i32, i32
  }
  func.func @transform_2(%arg0: i32) -> (i32, i32) {
    %c0_i32 = arith.constant 0 : i32
    %c0_i32_0 = arith.constant 0 : i32
    return %arg0, %c0_i32 : i32, i32
  }
  func.func @transform_3(%arg0: i32) -> (i32, i32) {
    %c0_i32 = arith.constant 0 : i32
    %c0_i32_0 = arith.constant 0 : i32
    return %arg0, %c0_i32 : i32, i32
  }
  func.func @transform_4(%arg0: i32) -> (i32, i32) {
    %c0_i32 = arith.constant 0 : i32
    %c0_i32_0 = arith.constant 0 : i32
    %c0_i32_1 = arith.constant 0 : i32
    return %c0_i32, %c0_i32_0 : i32, i32
  }
  func.func @transform_5(%arg0: i32) -> (i32, i32) {
    %c0_i32 = arith.constant 0 : i32
    %c0_i32_0 = arith.constant 0 : i32
    %c0_i32_1 = arith.constant 0 : i32
    return %c0_i32, %c0_i32_0 : i32, i32
  }
  func.func @transform_6(%arg0: i32) -> (i32, i32) {
    %c0_i32 = arith.constant 0 : i32
    %c0_i32_0 = arith.constant 0 : i32
    %c0_i32_1 = arith.constant 0 : i32
    return %c0_i32, %c0_i32_0 : i32, i32
  }
  func.func @transform_7(%arg0: i32) -> (i32, i32) {
    %c0_i32 = arith.constant 0 : i32
    %c0_i32_0 = arith.constant 0 : i32
    %c0_i32_1 = arith.constant 0 : i32
    return %c0_i32, %c0_i32_0 : i32, i32
  }
  func.func @transform_8(%arg0: i32) -> (i32, i32) {
    %c0_i32 = arith.constant 0 : i32
    %c0_i32_0 = arith.constant 0 : i32
    %c0_i32_1 = arith.constant 0 : i32
    return %c0_i32, %c0_i32_0 : i32, i32
  }
  func.func @transform_9(%arg0: i32) -> (i32, i32) {
    %c0_i32 = arith.constant 0 : i32
    %c0_i32_0 = arith.constant 0 : i32
    %c0_i32_1 = arith.constant 0 : i32
    return %c0_i32, %c0_i32_0 : i32, i32
  }
  func.func @transform_10(%arg0: i32) -> (i32, i32) {
    %c0_i32 = arith.constant 0 : i32
    %c0_i32_0 = arith.constant 0 : i32
    %c0_i32_1 = arith.constant 0 : i32
    return %c0_i32, %c0_i32_0 : i32, i32
  }
  func.func @transform_11(%arg0: i32) -> (i32, i32) {
    %c0_i32 = arith.constant 0 : i32
    %c0_i32_0 = arith.constant 0 : i32
    %c0_i32_1 = arith.constant 0 : i32
    return %c0_i32, %c0_i32_0 : i32, i32
  }
  func.func @transform_12(%arg0: i32) -> (i32, i32) {
    %c0_i32 = arith.constant 0 : i32
    %c0_i32_0 = arith.constant 0 : i32
    %c0_i32_1 = arith.constant 0 : i32
    return %c0_i32, %c0_i32_0 : i32, i32
  }
  func.func @transform_13(%arg0: i32) -> (i32, i32) {
    %c0_i32 = arith.constant 0 : i32
    %c0_i32_0 = arith.constant 0 : i32
    return %arg0, %c0_i32 : i32, i32
  }
}

</mosaic_0001>

<llo_original>
// kernel: decoder_forward.1
$region0: #{decoder_forward.1}
  #allocation0 [shape = 'u32[]', space=smem, size = 0x4, offset = 0x4, fixed_abs, tag = 'smem constant byte address 0x4 - core index']
  #allocation1 [shape = 'u32[72,128]{1,0:T(1,128)}', space=vmem, size = 0x9000, scoped, tag = 'internal scratch']
  %s0 = inlined_call_operand.vmem [shape: f32[16,8], index: 0, kind: input, shape index: {}]
  %s1 = inlined_call_operand.vmem [shape: f32[16,1], index: 1, kind: input, shape index: {}]
  %s2 = inlined_call_operand.vmem [shape: f32[16,2], index: 2, kind: input, shape index: {}]
  %s3 = inlined_call_operand.vmem [shape: f32[16,1], index: 3, kind: input, shape index: {}]
  %s4 = inlined_call_operand.vmem [shape: f32[8,20], index: 4, kind: input, shape index: {}]
  %s5 = inlined_call_operand.vmem [shape: f32[1,20], index: 5, kind: input, shape index: {}]
  %s6 = inlined_call_operand.vmem [shape: f32[2,20], index: 6, kind: input, shape index: {}]
  %s7 = inlined_call_operand.vmem [shape: f32[1,20], index: 7, kind: input, shape index: {}]
  %s8 = inlined_call_operand.vmem [shape: f32[1,20], index: 8, kind: input, shape index: {}]
  %s9 = inlined_call_operand.vmem [shape: f32[20,28], index: 9, kind: input, shape index: {}]
  %s10 = inlined_call_operand.vmem [shape: f32[1,28], index: 10, kind: input, shape index: {}]
  %s11 = inlined_call_operand.vmem [shape: f32[28,32], index: 11, kind: input, shape index: {}]
  %s12 = inlined_call_operand.vmem [shape: f32[1,32], index: 12, kind: input, shape index: {}]
  %s13 = inlined_call_operand.hbm [shape: f32[16,32], index: 13, kind: output, shape index: {}]
  %s14 = sld [smem:[#allocation0]]
  $region62: #{decoder_forward.1} parent=0
    _
  %s16 = ssub.s32 1, %s14
  %s17 = scalar_select 0, %s16, %s14
  $region1: #{decoder_forward.1} parent=0
    #allocation2 [shape = 'u8[8192]{0}', space=vmem, size = 0x2000, scoped, tag = 'output window, operand 0, single buffered']
    #allocation3 [shape = 's32[1]{0}', space=sflag, size = 0x4, scoped, tag = 'scoped memory for decoder_forward.1']
    %18 = vsyncpa [#allocation3], 0
    // Predicated region
    $region2: #{decoder_forward.1} parent=1 // pred_check
      _
    $region3: #{decoder_forward.1} parent=1 // pred_check_branch
      %20 = sbr.rel (0) target = $region5
    $region4: #{decoder_forward.1} parent=1 // pred_region
      _
    $region5: #{decoder_forward.1} parent=1 // pred_fallthru
      _
    // Predicated region
    $region6: #{decoder_forward.1} parent=1 // pred_check
      _
    $region7: #{decoder_forward.1} parent=1 // pred_check_branch
      %22 = sbr.rel (0) target = $region9
    $region8: #{decoder_forward.1} parent=1 // pred_region
      _
    $region9: #{decoder_forward.1} parent=1 // pred_fallthru
      _
    // Predicated region
    $region10: #{decoder_forward.1} parent=1 // pred_check
      _
    $region11: #{decoder_forward.1} parent=1 // pred_check_branch
      %24 = sbr.rel (0) target = $region13
    $region12: #{decoder_forward.1} parent=1 // pred_region
      _
    $region13: #{decoder_forward.1} parent=1 // pred_fallthru
      _
    // Predicated region
    $region14: #{decoder_forward.1} parent=1 // pred_check
      _
    $region15: #{decoder_forward.1} parent=1 // pred_check_branch
      %26 = sbr.rel (0) target = $region17
    $region16: #{decoder_forward.1} parent=1 // pred_region
      _
    $region17: #{decoder_forward.1} parent=1 // pred_fallthru
      _
    // Predicated region
    $region18: #{decoder_forward.1} parent=1 // pred_check
      _
    $region19: #{decoder_forward.1} parent=1 // pred_check_branch
      %28 = sbr.rel (0) target = $region21
    $region20: #{decoder_forward.1} parent=1 // pred_region
      _
    $region21: #{decoder_forward.1} parent=1 // pred_fallthru
      _
    // Predicated region
    $region22: #{decoder_forward.1} parent=1 // pred_check
      _
    $region23: #{decoder_forward.1} parent=1 // pred_check_branch
      %30 = sbr.rel (0) target = $region25
    $region24: #{decoder_forward.1} parent=1 // pred_region
      _
    $region25: #{decoder_forward.1} parent=1 // pred_fallthru
      _
    // Predicated region
    $region26: #{decoder_forward.1} parent=1 // pred_check
      _
    $region27: #{decoder_forward.1} parent=1 // pred_check_branch
      %32 = sbr.rel (0) target = $region29
    $region28: #{decoder_forward.1} parent=1 // pred_region
      _
    $region29: #{decoder_forward.1} parent=1 // pred_fallthru
      _
    // Predicated region
    $region30: #{decoder_forward.1} parent=1 // pred_check
      _
    $region31: #{decoder_forward.1} parent=1 // pred_check_branch
      %34 = sbr.rel (0) target = $region33
    $region32: #{decoder_forward.1} parent=1 // pred_region
      _
    $region33: #{decoder_forward.1} parent=1 // pred_fallthru
      _
    // Predicated region
    $region34: #{decoder_forward.1} parent=1 // pred_check
      _
    $region35: #{decoder_forward.1} parent=1 // pred_check_branch
      %36 = sbr.rel (0) target = $region37
    $region36: #{decoder_forward.1} parent=1 // pred_region
      _
    $region37: #{decoder_forward.1} parent=1 // pred_fallthru
      _
    // Predicated region
    $region38: #{decoder_forward.1} parent=1 // pred_check
      _
    $region39: #{decoder_forward.1} parent=1 // pred_check_branch
      %38 = sbr.rel (0) target = $region41
    $region40: #{decoder_forward.1} parent=1 // pred_region
      _
    $region41: #{decoder_forward.1} parent=1 // pred_fallthru
      _
    // Predicated region
    $region42: #{decoder_forward.1} parent=1 // pred_check
      _
    $region43: #{decoder_forward.1} parent=1 // pred_check_branch
      %40 = sbr.rel (0) target = $region45
    $region44: #{decoder_forward.1} parent=1 // pred_region
      _
    $region45: #{decoder_forward.1} parent=1 // pred_fallthru
      _
    // Predicated region
    $region46: #{decoder_forward.1} parent=1 // pred_check
      _
    $region47: #{decoder_forward.1} parent=1 // pred_check_branch
      %42 = sbr.rel (0) target = $region49
    $region48: #{decoder_forward.1} parent=1 // pred_region
      _
    $region49: #{decoder_forward.1} parent=1 // pred_fallthru
      _
    // Predicated region
    $region50: #{decoder_forward.1} parent=1 // pred_check
      _
    $region51: #{decoder_forward.1} parent=1 // pred_check_branch
      %44 = sbr.rel (0) target = $region53
    $region52: #{decoder_forward.1} parent=1 // pred_region
      _
    $region53: #{decoder_forward.1} parent=1 // pred_fallthru
      _
    %v45 = vld [vmem:[%s0] sm:$0xff]
    %v46 = vld [vmem:[%s0 + $0x8] sm:$0xff]
    %v47 = vld [vmem:[%s4] sm:$0xff]
    %v48 = vld [vmem:[%s2] sm:$0xff]
    %v49 = vld [vmem:[%s2 + $0x8] sm:$0xff]
    %v50 = vld [vmem:[%s6] sm:$0x3]
    %52 = vset.pattern.permute.xlu0 0
    %53 = vperm.xlu0 %52, %v48
    %v54 = vpop.permute.xlu0 %53
    %57 = vset.pattern.permute.xlu0 0
    %58 = vperm.xlu0 %57, %v49
    %v59 = vpop.permute.xlu0 %58
    %v61 = vperm.slane %v50, 0
    %v62 = vmul.f32 %v54, %v61
    %v63 = vmul.f32 %v59, %v61
    %vm64 = vcmask 64512
    %v66 = vsel %vm64, %v45, 0
    %v69 = vsel %vm64, %v46, 0
    %71 = vmatpush.msra.mxu0 0.0
    %72 = vmatpush.msra.mxu0 0.0
    %73 = vmatpush.msra.mxu0 0.0
    %74 = vmatpush.msra.mxu0 0.0
    %75 = vmatpush.msra.mxu0 0.0
    %76 = vmatpush.msra.mxu0 0.0
    %77 = vmatpush.msra.mxu0 0.0
    %78 = vmatpush.msra.mxu0 0.0
    %79 = vmatpush.msra.mxu0 0.0
    %80 = vmatpush.msra.mxu0 0.0
    %81 = vmatpush.msra.mxu0 0.0
    %82 = vmatpush.msra.mxu0 0.0
    %83 = vmatpush.msra.mxu0 0.0
    %84 = vmatpush.msra.mxu0 0.0
    %85 = vmatpush.msra.mxu0 0.0
    %v86 = vand.u32 %v47, 4294901760
    %87 = vmatpush.msra.mxu0 %v86
    %v88 = vand.u32 %v66, 4294901760
    %v89 = vsub.f32 %v66, %v88
    %v90 = vand.u32 %v89, 4294901760
    %v91 = vsub.f32 %v89, %v90
    %v92 = vand.u32 %v91, 4294901760
    %93 = vmatmul.f32.gmra.mxu0 %v92
    %v94 = vpop.f32.mrf.mxu0
    %v95 = vadd.f32 %v62, %v94
    %v96 = vand.u32 %v69, 4294901760
    %v97 = vsub.f32 %v69, %v96
    %v98 = vand.u32 %v97, 4294901760
    %v99 = vsub.f32 %v97, %v98
    %v100 = vand.u32 %v99, 4294901760
    %101 = vmatmul.f32.gmra.mxu0 %v100
    %v102 = vpop.f32.mrf.mxu0
    %v103 = vadd.f32 %v63, %v102
    %104 = vdwg.mxu0
    %105 = vmatpush.msra.mxu0 0.0
    %106 = vmatpush.msra.mxu0 0.0
    %107 = vmatpush.msra.mxu0 0.0
    %108 = vmatpush.msra.mxu0 0.0
    %109 = vmatpush.msra.mxu0 0.0
    %110 = vmatpush.msra.mxu0 0.0
    %111 = vmatpush.msra.mxu0 0.0
    %112 = vmatpush.msra.mxu0 0.0
    %113 = vmatpush.msra.mxu0 0.0
    %114 = vmatpush.msra.mxu0 0.0
    %115 = vmatpush.msra.mxu0 0.0
    %116 = vmatpush.msra.mxu0 0.0
    %117 = vmatpush.msra.mxu0 0.0
    %118 = vmatpush.msra.mxu0 0.0
    %119 = vmatpush.msra.mxu0 0.0
    %v120 = vand.u32 %v47, 4294901760
    %v121 = vsub.f32 %v47, %v120
    %v122 = vand.u32 %v121, 4294901760
    %v123 = vsub.f32 %v121, %v122
    %v124 = vand.u32 %v123, 4294901760
    %125 = vmatpush.msra.mxu0 %v124
    %v126 = vand.u32 %v66, 4294901760
    %127 = vmatmul.f32.gmra.mxu0 %v126
    %v128 = vpop.f32.mrf.mxu0
    %v129 = vadd.f32 %v95, %v128
    %v130 = vand.u32 %v69, 4294901760
    %131 = vmatmul.f32.gmra.mxu0 %v130
    %v132 = vpop.f32.mrf.mxu0
    %v133 = vadd.f32 %v103, %v132
    %134 = vdwg.mxu0
    %135 = vmatpush.msra.mxu0 0.0
    %136 = vmatpush.msra.mxu0 0.0
    %137 = vmatpush.msra.mxu0 0.0
    %138 = vmatpush.msra.mxu0 0.0
    %139 = vmatpush.msra.mxu0 0.0
    %140 = vmatpush.msra.mxu0 0.0
    %141 = vmatpush.msra.mxu0 0.0
    %142 = vmatpush.msra.mxu0 0.0
    %143 = vmatpush.msra.mxu0 0.0
    %144 = vmatpush.msra.mxu0 0.0
    %145 = vmatpush.msra.mxu0 0.0
    %146 = vmatpush.msra.mxu0 0.0
    %147 = vmatpush.msra.mxu0 0.0
    %148 = vmatpush.msra.mxu0 0.0
    %149 = vmatpush.msra.mxu0 0.0
    %v150 = vand.u32 %v47, 4294901760
    %v151 = vsub.f32 %v47, %v150
    %152 = vmatpush.msra.mxu0 %v151
    %v153 = vand.u32 %v66, 4294901760
    %v154 = vsub.f32 %v66, %v153
    %155 = vmatmul.f32.gmra.mxu0 %v154
    %v156 = vpop.f32.mrf.mxu0
    %v157 = vadd.f32 %v129, %v156
    %v158 = vand.u32 %v69, 4294901760
    %v159 = vsub.f32 %v69, %v158
    %160 = vmatmul.f32.gmra.mxu0 %v159
    %v161 = vpop.f32.mrf.mxu0
    %v162 = vadd.f32 %v133, %v161
    %163 = vdwg.mxu0
    %164 = vmatpush.msra.mxu0 0.0
    %165 = vmatpush.msra.mxu0 0.0
    %166 = vmatpush.msra.mxu0 0.0
    %167 = vmatpush.msra.mxu0 0.0
    %168 = vmatpush.msra.mxu0 0.0
    %169 = vmatpush.msra.mxu0 0.0
    %170 = vmatpush.msra.mxu0 0.0
    %171 = vmatpush.msra.mxu0 0.0
    %172 = vmatpush.msra.mxu0 0.0
    %173 = vmatpush.msra.mxu0 0.0
    %174 = vmatpush.msra.mxu0 0.0
    %175 = vmatpush.msra.mxu0 0.0
    %176 = vmatpush.msra.mxu0 0.0
    %177 = vmatpush.msra.mxu0 0.0
    %178 = vmatpush.msra.mxu0 0.0
    %v179 = vand.u32 %v47, 4294901760
    %180 = vmatpush.msra.mxu0 %v179
    %v181 = vand.u32 %v66, 4294901760
    %v182 = vsub.f32 %v66, %v181
    %v183 = vand.u32 %v182, 4294901760
    %184 = vmatmul.f32.gmra.mxu0 %v183
    %v185 = vpop.f32.mrf.mxu0
    %v186 = vadd.f32 %v157, %v185
    %v187 = vand.u32 %v69, 4294901760
    %v188 = vsub.f32 %v69, %v187
    %v189 = vand.u32 %v188, 4294901760
    %190 = vmatmul.f32.gmra.mxu0 %v189
    %v191 = vpop.f32.mrf.mxu0
    %v192 = vadd.f32 %v162, %v191
    %193 = vdwg.mxu0
    %194 = vmatpush.msra.mxu0 0.0
    %195 = vmatpush.msra.mxu0 0.0
    %196 = vmatpush.msra.mxu0 0.0
    %197 = vmatpush.msra.mxu0 0.0
    %198 = vmatpush.msra.mxu0 0.0
    %199 = vmatpush.msra.mxu0 0.0
    %200 = vmatpush.msra.mxu0 0.0
    %201 = vmatpush.msra.mxu0 0.0
    %202 = vmatpush.msra.mxu0 0.0
    %203 = vmatpush.msra.mxu0 0.0
    %204 = vmatpush.msra.mxu0 0.0
    %205 = vmatpush.msra.mxu0 0.0
    %206 = vmatpush.msra.mxu0 0.0
    %207 = vmatpush.msra.mxu0 0.0
    %208 = vmatpush.msra.mxu0 0.0
    %v209 = vand.u32 %v47, 4294901760
    %v210 = vsub.f32 %v47, %v209
    %v211 = vand.u32 %v210, 4294901760
    %212 = vmatpush.msra.mxu0 %v211
    %v213 = vand.u32 %v66, 4294901760
    %214 = vmatmul.f32.gmra.mxu0 %v213
    %v215 = vpop.f32.mrf.mxu0
    %v216 = vadd.f32 %v186, %v215
    %v217 = vand.u32 %v69, 4294901760
    %218 = vmatmul.f32.gmra.mxu0 %v217
    %v219 = vpop.f32.mrf.mxu0
    %v220 = vadd.f32 %v192, %v219
    %221 = vdwg.mxu0
    %222 = vmatpush.msra.mxu0 0.0
    %223 = vmatpush.msra.mxu0 0.0
    %224 = vmatpush.msra.mxu0 0.0
    %225 = vmatpush.msra.mxu0 0.0
    %226 = vmatpush.msra.mxu0 0.0
    %227 = vmatpush.msra.mxu0 0.0
    %228 = vmatpush.msra.mxu0 0.0
    %229 = vmatpush.msra.mxu0 0.0
    %230 = vmatpush.msra.mxu0 0.0
    %231 = vmatpush.msra.mxu0 0.0
    %232 = vmatpush.msra.mxu0 0.0
    %233 = vmatpush.msra.mxu0 0.0
    %234 = vmatpush.msra.mxu0 0.0
    %235 = vmatpush.msra.mxu0 0.0
    %236 = vmatpush.msra.mxu0 0.0
    %v237 = vand.u32 %v47, 4294901760
    %238 = vmatpush.msra.mxu0 %v237
    %v239 = vand.u32 %v66, 4294901760
    %240 = vmatmul.f32.gmra.mxu0 %v239
    %v241 = vpop.f32.mrf.mxu0
    %v242 = vadd.f32 %v216, %v241
    %v243 = vand.u32 %v69, 4294901760
    %244 = vmatmul.f32.gmra.mxu0 %v243
    %v245 = vpop.f32.mrf.mxu0
    %v246 = vadd.f32 %v220, %v245
    %247 = vdwg.mxu0
    %248 = vset.pattern.permute.xlu0 1
    %249 = vperm.xlu0 %248, %v48
    %v250 = vpop.permute.xlu0 %249
    %252 = vset.pattern.permute.xlu0 1
    %253 = vperm.xlu0 %252, %v49
    %v254 = vpop.permute.xlu0 %253
    %v256 = vperm.slane %v50, 1
    %v257 = vmul.f32 %v250, %v256
    %v258 = vmul.f32 %v254, %v256
    %v259 = vadd.f32 %v242, %v257
    %v260 = vadd.f32 %v246, %v258
    %v261 = vld [vmem:[%s1] sm:$0xff]
    %v262 = vld [vmem:[%s1 + $0x8] sm:$0xff]
    %v263 = vld [vmem:[%s5] sm:$0x1]
    %265 = vset.pattern.permute.xlu0 0
    %266 = vperm.xlu0 %265, %v261
    %v267 = vpop.permute.xlu0 %266
    %270 = vset.pattern.permute.xlu0 0
    %271 = vperm.xlu0 %270, %v262
    %v272 = vpop.permute.xlu0 %271
    %v275 = vperm.slane %v263, 0
    %v277 = vmul.f32 %v267, %v275
    %v278 = vmul.f32 %v272, %v275
    %v279 = vadd.f32 %v259, %v277
    %v280 = vadd.f32 %v260, %v278
    %v281 = vld [vmem:[%s3] sm:$0xff]
    %v282 = vld [vmem:[%s3 + $0x8] sm:$0xff]
    %v283 = vld [vmem:[%s7] sm:$0x1]
    %285 = vset.pattern.permute.xlu0 0
    %286 = vperm.xlu0 %285, %v281
    %v287 = vpop.permute.xlu0 %286
    %290 = vset.pattern.permute.xlu0 0
    %291 = vperm.xlu0 %290, %v282
    %v292 = vpop.permute.xlu0 %291
    %v295 = vperm.slane %v283, 0
    %v297 = vmul.f32 %v287, %v295
    %v298 = vmul.f32 %v292, %v295
    %v299 = vadd.f32 %v279, %v297
    %v300 = vadd.f32 %v280, %v298
    %v301 = vld [vmem:[%s8] sm:$0x1]
    %v303 = vperm.slane %v301, 0
    %v305 = vadd.f32 %v299, %v303
    %v306 = vadd.f32 %v300, %v303
    %v307 = vmax.f32 %v305, 0.0
    %v308 = vmax.f32 %v306, 0.0
    %v309 = vld [vmem:[%s9] sm:$0xff]
    %v310 = vld [vmem:[%s9 + $0x8] sm:$0xff]
    %v311 = vld [vmem:[%s9 + $0x10] sm:$0xf]
    %v312 = vld [vmem:[%s10] sm:$0x1]
    %v314 = vperm.slane %v312, 0
    %vm316 = vcmask 162816
    %v318 = vsel %vm316, %v307, 0
    %v321 = vsel %vm316, %v308, 0
    %vm323 = vcmask 1043456
    %v325 = vsel %vm323, %v311, 0
    %327 = vmatpush.msra.mxu0 0.0
    %328 = vmatpush.msra.mxu0 0.0
    %329 = vmatpush.msra.mxu0 0.0
    %330 = vmatpush.msra.mxu0 0.0
    %331 = vmatpush.msra.mxu0 0.0
    %332 = vmatpush.msra.mxu0 0.0
    %333 = vmatpush.msra.mxu0 0.0
    %334 = vmatpush.msra.mxu0 0.0
    %335 = vmatpush.msra.mxu0 0.0
    %336 = vmatpush.msra.mxu0 0.0
    %337 = vmatpush.msra.mxu0 0.0
    %338 = vmatpush.msra.mxu0 0.0
    %339 = vmatpush.msra.mxu0 0.0
    %v340 = vand.u32 %v325, 4294901760
    %341 = vmatpush.msra.mxu0 %v340
    %v342 = vand.u32 %v310, 4294901760
    %343 = vmatpush.msra.mxu0 %v342
    %v344 = vand.u32 %v309, 4294901760
    %345 = vmatpush.msra.mxu0 %v344
    %v346 = vand.u32 %v318, 4294901760
    %v347 = vsub.f32 %v318, %v346
    %v348 = vand.u32 %v347, 4294901760
    %v349 = vsub.f32 %v347, %v348
    %v350 = vand.u32 %v349, 4294901760
    %351 = vmatmul.f32.gmra.mxu0 %v350
    %v352 = vpop.f32.mrf.mxu0
    %v353 = vadd.f32 %v314, %v352
    %v354 = vand.u32 %v321, 4294901760
    %v355 = vsub.f32 %v321, %v354
    %v356 = vand.u32 %v355, 4294901760
    %v357 = vsub.f32 %v355, %v356
    %v358 = vand.u32 %v357, 4294901760
    %359 = vmatmul.f32.gmra.mxu0 %v358
    %v360 = vpop.f32.mrf.mxu0
    %v361 = vadd.f32 %v314, %v360
    %362 = vdwg.mxu0
    %363 = vmatpush.msra.mxu0 0.0
    %364 = vmatpush.msra.mxu0 0.0
    %365 = vmatpush.msra.mxu0 0.0
    %366 = vmatpush.msra.mxu0 0.0
    %367 = vmatpush.msra.mxu0 0.0
    %368 = vmatpush.msra.mxu0 0.0
    %369 = vmatpush.msra.mxu0 0.0
    %370 = vmatpush.msra.mxu0 0.0
    %371 = vmatpush.msra.mxu0 0.0
    %372 = vmatpush.msra.mxu0 0.0
    %373 = vmatpush.msra.mxu0 0.0
    %374 = vmatpush.msra.mxu0 0.0
    %375 = vmatpush.msra.mxu0 0.0
    %v376 = vand.u32 %v325, 4294901760
    %v377 = vsub.f32 %v325, %v376
    %v378 = vand.u32 %v377, 4294901760
    %v379 = vsub.f32 %v377, %v378
    %v380 = vand.u32 %v379, 4294901760
    %381 = vmatpush.msra.mxu0 %v380
    %v382 = vand.u32 %v310, 4294901760
    %v383 = vsub.f32 %v310, %v382
    %v384 = vand.u32 %v383, 4294901760
    %v385 = vsub.f32 %v383, %v384
    %v386 = vand.u32 %v385, 4294901760
    %387 = vmatpush.msra.mxu0 %v386
    %v388 = vand.u32 %v309, 4294901760
    %v389 = vsub.f32 %v309, %v388
    %v390 = vand.u32 %v389, 4294901760
    %v391 = vsub.f32 %v389, %v390
    %v392 = vand.u32 %v391, 4294901760
    %393 = vmatpush.msra.mxu0 %v392
    %v394 = vand.u32 %v318, 4294901760
    %395 = vmatmul.f32.gmra.mxu0 %v394
    %v396 = vpop.f32.mrf.mxu0
    %v397 = vadd.f32 %v353, %v396
    %v398 = vand.u32 %v321, 4294901760
    %399 = vmatmul.f32.gmra.mxu0 %v398
    %v400 = vpop.f32.mrf.mxu0
    %v401 = vadd.f32 %v361, %v400
    %402 = vdwg.mxu0
    %403 = vmatpush.msra.mxu0 0.0
    %404 = vmatpush.msra.mxu0 0.0
    %405 = vmatpush.msra.mxu0 0.0
    %406 = vmatpush.msra.mxu0 0.0
    %407 = vmatpush.msra.mxu0 0.0
    %408 = vmatpush.msra.mxu0 0.0
    %409 = vmatpush.msra.mxu0 0.0
    %410 = vmatpush.msra.mxu0 0.0
    %411 = vmatpush.msra.mxu0 0.0
    %412 = vmatpush.msra.mxu0 0.0
    %413 = vmatpush.msra.mxu0 0.0
    %414 = vmatpush.msra.mxu0 0.0
    %415 = vmatpush.msra.mxu0 0.0
    %v416 = vand.u32 %v325, 4294901760
    %v417 = vsub.f32 %v325, %v416
    %418 = vmatpush.msra.mxu0 %v417
    %v419 = vand.u32 %v310, 4294901760
    %v420 = vsub.f32 %v310, %v419
    %421 = vmatpush.msra.mxu0 %v420
    %v422 = vand.u32 %v309, 4294901760
    %v423 = vsub.f32 %v309, %v422
    %424 = vmatpush.msra.mxu0 %v423
    %v425 = vand.u32 %v318, 4294901760
    %v426 = vsub.f32 %v318, %v425
    %427 = vmatmul.f32.gmra.mxu0 %v426
    %v428 = vpop.f32.mrf.mxu0
    %v429 = vadd.f32 %v397, %v428
    %v430 = vand.u32 %v321, 4294901760
    %v431 = vsub.f32 %v321, %v430
    %432 = vmatmul.f32.gmra.mxu0 %v431
    %v433 = vpop.f32.mrf.mxu0
    %v434 = vadd.f32 %v401, %v433
    %435 = vdwg.mxu0
    %436 = vmatpush.msra.mxu0 0.0
    %437 = vmatpush.msra.mxu0 0.0
    %438 = vmatpush.msra.mxu0 0.0
    %439 = vmatpush.msra.mxu0 0.0
    %440 = vmatpush.msra.mxu0 0.0
    %441 = vmatpush.msra.mxu0 0.0
    %442 = vmatpush.msra.mxu0 0.0
    %443 = vmatpush.msra.mxu0 0.0
    %444 = vmatpush.msra.mxu0 0.0
    %445 = vmatpush.msra.mxu0 0.0
    %446 = vmatpush.msra.mxu0 0.0
    %447 = vmatpush.msra.mxu0 0.0
    %448 = vmatpush.msra.mxu0 0.0
    %v449 = vand.u32 %v325, 4294901760
    %450 = vmatpush.msra.mxu0 %v449
    %v451 = vand.u32 %v310, 4294901760
    %452 = vmatpush.msra.mxu0 %v451
    %v453 = vand.u32 %v309, 4294901760
    %454 = vmatpush.msra.mxu0 %v453
    %v455 = vand.u32 %v318, 4294901760
    %v456 = vsub.f32 %v318, %v455
    %v457 = vand.u32 %v456, 4294901760
    %458 = vmatmul.f32.gmra.mxu0 %v457
    %v459 = vpop.f32.mrf.mxu0
    %v460 = vadd.f32 %v429, %v459
    %v461 = vand.u32 %v321, 4294901760
    %v462 = vsub.f32 %v321, %v461
    %v463 = vand.u32 %v462, 4294901760
    %464 = vmatmul.f32.gmra.mxu0 %v463
    %v465 = vpop.f32.mrf.mxu0
    %v466 = vadd.f32 %v434, %v465
    %467 = vdwg.mxu0
    %468 = vmatpush.msra.mxu0 0.0
    %469 = vmatpush.msra.mxu0 0.0
    %470 = vmatpush.msra.mxu0 0.0
    %471 = vmatpush.msra.mxu0 0.0
    %472 = vmatpush.msra.mxu0 0.0
    %473 = vmatpush.msra.mxu0 0.0
    %474 = vmatpush.msra.mxu0 0.0
    %475 = vmatpush.msra.mxu0 0.0
    %476 = vmatpush.msra.mxu0 0.0
    %477 = vmatpush.msra.mxu0 0.0
    %478 = vmatpush.msra.mxu0 0.0
    %479 = vmatpush.msra.mxu0 0.0
    %480 = vmatpush.msra.mxu0 0.0
    %v481 = vand.u32 %v325, 4294901760
    %v482 = vsub.f32 %v325, %v481
    %v483 = vand.u32 %v482, 4294901760
    %484 = vmatpush.msra.mxu0 %v483
    %v485 = vand.u32 %v310, 4294901760
    %v486 = vsub.f32 %v310, %v485
    %v487 = vand.u32 %v486, 4294901760
    %488 = vmatpush.msra.mxu0 %v487
    %v489 = vand.u32 %v309, 4294901760
    %v490 = vsub.f32 %v309, %v489
    %v491 = vand.u32 %v490, 4294901760
    %492 = vmatpush.msra.mxu0 %v491
    %v493 = vand.u32 %v318, 4294901760
    %494 = vmatmul.f32.gmra.mxu0 %v493
    %v495 = vpop.f32.mrf.mxu0
    %v496 = vadd.f32 %v460, %v495
    %v497 = vand.u32 %v321, 4294901760
    %498 = vmatmul.f32.gmra.mxu0 %v497
    %v499 = vpop.f32.mrf.mxu0
    %v500 = vadd.f32 %v466, %v499
    %501 = vdwg.mxu0
    %502 = vmatpush.msra.mxu0 0.0
    %503 = vmatpush.msra.mxu0 0.0
    %504 = vmatpush.msra.mxu0 0.0
    %505 = vmatpush.msra.mxu0 0.0
    %506 = vmatpush.msra.mxu0 0.0
    %507 = vmatpush.msra.mxu0 0.0
    %508 = vmatpush.msra.mxu0 0.0
    %509 = vmatpush.msra.mxu0 0.0
    %510 = vmatpush.msra.mxu0 0.0
    %511 = vmatpush.msra.mxu0 0.0
    %512 = vmatpush.msra.mxu0 0.0
    %513 = vmatpush.msra.mxu0 0.0
    %514 = vmatpush.msra.mxu0 0.0
    %v515 = vand.u32 %v325, 4294901760
    %516 = vmatpush.msra.mxu0 %v515
    %v517 = vand.u32 %v310, 4294901760
    %518 = vmatpush.msra.mxu0 %v517
    %v519 = vand.u32 %v309, 4294901760
    %520 = vmatpush.msra.mxu0 %v519
    %v521 = vand.u32 %v318, 4294901760
    %522 = vmatmul.f32.gmra.mxu0 %v521
    %v523 = vpop.f32.mrf.mxu0
    %v524 = vadd.f32 %v496, %v523
    %v525 = vand.u32 %v321, 4294901760
    %526 = vmatmul.f32.gmra.mxu0 %v525
    %v527 = vpop.f32.mrf.mxu0
    %v528 = vadd.f32 %v500, %v527
    %529 = vdwg.mxu0
    %v530 = vmax.f32 %v524, 0.0
    %v531 = vmax.f32 %v528, 0.0
    %v532 = vld [vmem:[%s11] sm:$0xff]
    %v533 = vld [vmem:[%s11 + $0x8] sm:$0xff]
    %v534 = vld [vmem:[%s11 + $0x10] sm:$0xff]
    %v535 = vld [vmem:[%s11 + $0x18] sm:$0xf]
    %v536 = vld [vmem:[%s12] sm:$0x1]
    %v538 = vperm.slane %v536, 0
    %vm540 = vcmask 228352
    %v542 = vsel %vm540, %v530, 0
    %v545 = vsel %vm540, %v531, 0
    %v548 = vsel %vm323, %v535, 0
    %550 = vmatpush.msra.mxu0 0.0
    %551 = vmatpush.msra.mxu0 0.0
    %552 = vmatpush.msra.mxu0 0.0
    %553 = vmatpush.msra.mxu0 0.0
    %554 = vmatpush.msra.mxu0 0.0
    %555 = vmatpush.msra.mxu0 0.0
    %556 = vmatpush.msra.mxu0 0.0
    %557 = vmatpush.msra.mxu0 0.0
    %558 = vmatpush.msra.mxu0 0.0
    %559 = vmatpush.msra.mxu0 0.0
    %560 = vmatpush.msra.mxu0 0.0
    %561 = vmatpush.msra.mxu0 0.0
    %v562 = vand.u32 %v548, 4294901760
    %563 = vmatpush.msra.mxu0 %v562
    %v564 = vand.u32 %v534, 4294901760
    %565 = vmatpush.msra.mxu0 %v564
    %v566 = vand.u32 %v533, 4294901760
    %567 = vmatpush.msra.mxu0 %v566
    %v568 = vand.u32 %v532, 4294901760
    %569 = vmatpush.msra.mxu0 %v568
    %v570 = vand.u32 %v542, 4294901760
    %v571 = vsub.f32 %v542, %v570
    %v572 = vand.u32 %v571, 4294901760
    %v573 = vsub.f32 %v571, %v572
    %v574 = vand.u32 %v573, 4294901760
    %575 = vmatmul.f32.gmra.mxu0 %v574
    %v576 = vpop.f32.mrf.mxu0
    %v577 = vadd.f32 %v538, %v576
    %v578 = vand.u32 %v545, 4294901760
    %v579 = vsub.f32 %v545, %v578
    %v580 = vand.u32 %v579, 4294901760
    %v581 = vsub.f32 %v579, %v580
    %v582 = vand.u32 %v581, 4294901760
    %583 = vmatmul.f32.gmra.mxu0 %v582
    %v584 = vpop.f32.mrf.mxu0
    %v585 = vadd.f32 %v538, %v584
    %586 = vdwg.mxu0
    %587 = vmatpush.msra.mxu0 0.0
    %588 = vmatpush.msra.mxu0 0.0
    %589 = vmatpush.msra.mxu0 0.0
    %590 = vmatpush.msra.mxu0 0.0
    %591 = vmatpush.msra.mxu0 0.0
    %592 = vmatpush.msra.mxu0 0.0
    %593 = vmatpush.msra.mxu0 0.0
    %594 = vmatpush.msra.mxu0 0.0
    %595 = vmatpush.msra.mxu0 0.0
    %596 = vmatpush.msra.mxu0 0.0
    %597 = vmatpush.msra.mxu0 0.0
    %598 = vmatpush.msra.mxu0 0.0
    %v599 = vand.u32 %v548, 4294901760
    %v600 = vsub.f32 %v548, %v599
    %v601 = vand.u32 %v600, 4294901760
    %v602 = vsub.f32 %v600, %v601
    %v603 = vand.u32 %v602, 4294901760
    %604 = vmatpush.msra.mxu0 %v603
    %v605 = vand.u32 %v534, 4294901760
    %v606 = vsub.f32 %v534, %v605
    %v607 = vand.u32 %v606, 4294901760
    %v608 = vsub.f32 %v606, %v607
    %v609 = vand.u32 %v608, 4294901760
    %610 = vmatpush.msra.mxu0 %v609
    %v611 = vand.u32 %v533, 4294901760
    %v612 = vsub.f32 %v533, %v611
    %v613 = vand.u32 %v612, 4294901760
    %v614 = vsub.f32 %v612, %v613
    %v615 = vand.u32 %v614, 4294901760
    %616 = vmatpush.msra.mxu0 %v615
    %v617 = vand.u32 %v532, 4294901760
    %v618 = vsub.f32 %v532, %v617
    %v619 = vand.u32 %v618, 4294901760
    %v620 = vsub.f32 %v618, %v619
    %v621 = vand.u32 %v620, 4294901760
    %622 = vmatpush.msra.mxu0 %v621
    %v623 = vand.u32 %v542, 4294901760
    %624 = vmatmul.f32.gmra.mxu0 %v623
    %v625 = vpop.f32.mrf.mxu0
    %v626 = vadd.f32 %v577, %v625
    %v627 = vand.u32 %v545, 4294901760
    %628 = vmatmul.f32.gmra.mxu0 %v627
    %v629 = vpop.f32.mrf.mxu0
    %v630 = vadd.f32 %v585, %v629
    %631 = vdwg.mxu0
    %632 = vmatpush.msra.mxu0 0.0
    %633 = vmatpush.msra.mxu0 0.0
    %634 = vmatpush.msra.mxu0 0.0
    %635 = vmatpush.msra.mxu0 0.0
    %636 = vmatpush.msra.mxu0 0.0
    %637 = vmatpush.msra.mxu0 0.0
    %638 = vmatpush.msra.mxu0 0.0
    %639 = vmatpush.msra.mxu0 0.0
    %640 = vmatpush.msra.mxu0 0.0
    %641 = vmatpush.msra.mxu0 0.0
    %642 = vmatpush.msra.mxu0 0.0
    %643 = vmatpush.msra.mxu0 0.0
    %v644 = vand.u32 %v548, 4294901760
    %v645 = vsub.f32 %v548, %v644
    %646 = vmatpush.msra.mxu0 %v645
    %v647 = vand.u32 %v534, 4294901760
    %v648 = vsub.f32 %v534, %v647
    %649 = vmatpush.msra.mxu0 %v648
    %v650 = vand.u32 %v533, 4294901760
    %v651 = vsub.f32 %v533, %v650
    %652 = vmatpush.msra.mxu0 %v651
    %v653 = vand.u32 %v532, 4294901760
    %v654 = vsub.f32 %v532, %v653
    %655 = vmatpush.msra.mxu0 %v654
    %v656 = vand.u32 %v542, 4294901760
    %v657 = vsub.f32 %v542, %v656
    %658 = vmatmul.f32.gmra.mxu0 %v657
    %v659 = vpop.f32.mrf.mxu0
    %v660 = vadd.f32 %v626, %v659
    %v661 = vand.u32 %v545, 4294901760
    %v662 = vsub.f32 %v545, %v661
    %663 = vmatmul.f32.gmra.mxu0 %v662
    %v664 = vpop.f32.mrf.mxu0
    %v665 = vadd.f32 %v630, %v664
    %666 = vdwg.mxu0
    %667 = vmatpush.msra.mxu0 0.0
    %668 = vmatpush.msra.mxu0 0.0
    %669 = vmatpush.msra.mxu0 0.0
    %670 = vmatpush.msra.mxu0 0.0
    %671 = vmatpush.msra.mxu0 0.0
    %672 = vmatpush.msra.mxu0 0.0
    %673 = vmatpush.msra.mxu0 0.0
    %674 = vmatpush.msra.mxu0 0.0
    %675 = vmatpush.msra.mxu0 0.0
    %676 = vmatpush.msra.mxu0 0.0
    %677 = vmatpush.msra.mxu0 0.0
    %678 = vmatpush.msra.mxu0 0.0
    %v679 = vand.u32 %v548, 4294901760
    %680 = vmatpush.msra.mxu0 %v679
    %v681 = vand.u32 %v534, 4294901760
    %682 = vmatpush.msra.mxu0 %v681
    %v683 = vand.u32 %v533, 4294901760
    %684 = vmatpush.msra.mxu0 %v683
    %v685 = vand.u32 %v532, 4294901760
    %686 = vmatpush.msra.mxu0 %v685
    %v687 = vand.u32 %v542, 4294901760
    %v688 = vsub.f32 %v542, %v687
    %v689 = vand.u32 %v688, 4294901760
    %690 = vmatmul.f32.gmra.mxu0 %v689
    %v691 = vpop.f32.mrf.mxu0
    %v692 = vadd.f32 %v660, %v691
    %v693 = vand.u32 %v545, 4294901760
    %v694 = vsub.f32 %v545, %v693
    %v695 = vand.u32 %v694, 4294901760
    %696 = vmatmul.f32.gmra.mxu0 %v695
    %v697 = vpop.f32.mrf.mxu0
    %v698 = vadd.f32 %v665, %v697
    %699 = vdwg.mxu0
    %700 = vmatpush.msra.mxu0 0.0
    %701 = vmatpush.msra.mxu0 0.0
    %702 = vmatpush.msra.mxu0 0.0
    %703 = vmatpush.msra.mxu0 0.0
    %704 = vmatpush.msra.mxu0 0.0
    %705 = vmatpush.msra.mxu0 0.0
    %706 = vmatpush.msra.mxu0 0.0
    %707 = vmatpush.msra.mxu0 0.0
    %708 = vmatpush.msra.mxu0 0.0
    %709 = vmatpush.msra.mxu0 0.0
    %710 = vmatpush.msra.mxu0 0.0
    %711 = vmatpush.msra.mxu0 0.0
    %v712 = vand.u32 %v548, 4294901760
    %v713 = vsub.f32 %v548, %v712
    %v714 = vand.u32 %v713, 4294901760
    %715 = vmatpush.msra.mxu0 %v714
    %v716 = vand.u32 %v534, 4294901760
    %v717 = vsub.f32 %v534, %v716
    %v718 = vand.u32 %v717, 4294901760
    %719 = vmatpush.msra.mxu0 %v718
    %v720 = vand.u32 %v533, 4294901760
    %v721 = vsub.f32 %v533, %v720
    %v722 = vand.u32 %v721, 4294901760
    %723 = vmatpush.msra.mxu0 %v722
    %v724 = vand.u32 %v532, 4294901760
    %v725 = vsub.f32 %v532, %v724
    %v726 = vand.u32 %v725, 4294901760
    %727 = vmatpush.msra.mxu0 %v726
    %v728 = vand.u32 %v542, 4294901760
    %729 = vmatmul.f32.gmra.mxu0 %v728
    %v730 = vpop.f32.mrf.mxu0
    %v731 = vadd.f32 %v692, %v730
    %v732 = vand.u32 %v545, 4294901760
    %733 = vmatmul.f32.gmra.mxu0 %v732
    %v734 = vpop.f32.mrf.mxu0
    %v735 = vadd.f32 %v698, %v734
    %736 = vdwg.mxu0
    %737 = vmatpush.msra.mxu0 0.0
    %738 = vmatpush.msra.mxu0 0.0
    %739 = vmatpush.msra.mxu0 0.0
    %740 = vmatpush.msra.mxu0 0.0
    %741 = vmatpush.msra.mxu0 0.0
    %742 = vmatpush.msra.mxu0 0.0
    %743 = vmatpush.msra.mxu0 0.0
    %744 = vmatpush.msra.mxu0 0.0
    %745 = vmatpush.msra.mxu0 0.0
    %746 = vmatpush.msra.mxu0 0.0
    %747 = vmatpush.msra.mxu0 0.0
    %748 = vmatpush.msra.mxu0 0.0
    %v749 = vand.u32 %v548, 4294901760
    %750 = vmatpush.msra.mxu0 %v749
    %v751 = vand.u32 %v534, 4294901760
    %752 = vmatpush.msra.mxu0 %v751
    %v753 = vand.u32 %v533, 4294901760
    %754 = vmatpush.msra.mxu0 %v753
    %v755 = vand.u32 %v532, 4294901760
    %756 = vmatpush.msra.mxu0 %v755
    %v757 = vand.u32 %v542, 4294901760
    %758 = vmatmul.f32.gmra.mxu0 %v757
    %v759 = vpop.f32.mrf.mxu0
    %v760 = vadd.f32 %v731, %v759
    %v761 = vand.u32 %v545, 4294901760
    %762 = vmatmul.f32.gmra.mxu0 %v761
    %v763 = vpop.f32.mrf.mxu0
    %v764 = vadd.f32 %v735, %v763
    %765 = vdwg.mxu0
    %v766 = vsub.f32 0.0, %v760
    %v767 = vsub.f32 0.0, %v764
    %v768 = vmul.f32 %v766, 1.442695
    %v769 = vpow.pop %v768
    %v770 = vmul.f32 %v767, 1.442695
    %v771 = vpow.pop %v770
    %v772 = vadd.f32 %v769, 1.0
    %v773 = vadd.f32 %v771, 1.0
    %v774 = vrcp.pop %v772
    %v775 = vmul.f32 %v772, %v774
    %v776 = vsub.f32 1.0, %v775
    %v777 = vmul.f32 %v774, %v776
    %v778 = vadd.f32 %v774, %v777
    %vm779 = vweird.f32 %v772
    %vm780 = vweird.f32 %v774
    %vm781 = vmor %vm779, %vm780
    %v782 = vsel %vm781, %v774, %v778
    %v783 = vand.u32 2147483647, %v772
    %vm784 = vcmp.eq.f32.partialorder %v783, 8.507059e+37
    %v785 = vand.u32 %v772, 2147483648
    %v786 = vor.u32 1.1754944e-38, %v785
    %v787 = vsel %vm784, %v786, %v782
    %v788 = vmul.f32 1.0, %v787
    %v789 = vrcp.pop %v773
    %v790 = vmul.f32 %v773, %v789
    %v791 = vsub.f32 1.0, %v790
    %v792 = vmul.f32 %v789, %v791
    %v793 = vadd.f32 %v789, %v792
    %vm794 = vweird.f32 %v773
    %vm795 = vweird.f32 %v789
    %vm796 = vmor %vm794, %vm795
    %v797 = vsel %vm796, %v789, %v793
    %v798 = vand.u32 2147483647, %v773
    %vm799 = vcmp.eq.f32.partialorder %v798, 8.507059e+37
    %v800 = vand.u32 %v773, 2147483648
    %v801 = vor.u32 1.1754944e-38, %v800
    %v802 = vsel %vm799, %v801, %v797
    %v803 = vmul.f32 1.0, %v802
    %vm804 = vcmask 261120
    %805 = vst.msk [vmem:[#allocation2] sm:$0xff] %vm804, %v788
    %806 = vst.msk [vmem:[#allocation2 + $0x8] sm:$0xff] %vm804, %v803
    // Predicated region
    $region54: #{decoder_forward.1} parent=1 // pred_check
      _
    $region55: #{decoder_forward.1} parent=1 // pred_check_branch
      %808 = sbr.rel (0) target = $region57
    $region56: #{decoder_forward.1} parent=1 // pred_region
      %810 = vsyncadd [#allocation3], 0
      %s811 = sshll.u32 [#allocation2], 4
      %s812 = int_to_ptr.vmem [resolvable:$true] %s811
      %s813 = sshll.u32 %s13, 4
      %s814 = int_to_ptr.hbm [resolvable:$true] %s813
      %819 = dma.vmem_to_hbm [thread:$0]  %s812, 256, %s814, [#allocation3], 128, 128, 8
    $region57: #{decoder_forward.1} parent=1 // pred_fallthru
      _
    // Predicated region
    $region58: #{decoder_forward.1} parent=1 // pred_check
      _
    $region59: #{decoder_forward.1} parent=1 // pred_check_branch
      %821 = sbr.rel (0) target = $region61
    $region60: #{decoder_forward.1} parent=1 // pred_region
      %823 = dma.done [#allocation3], 256
    $region61: #{decoder_forward.1} parent=1 // pred_fallthru
      _
    %824 = vsyncpa [#allocation3], 1

</llo_original>
